<compile_context>
chip_gen: v7x
topology: tpu7x:2x2x1
jax: 0.10.0
libtpu: 0.0.40
codegen_flags: <defaults>
</compile_context>

<pallas_src>
import functools

import jax
import jax.numpy as jnp
from jax.experimental import pallas as pl
from jax.experimental.pallas import tpu as pltpu


def _round_up(x, m):
    return (x + m - 1) // m * m


# ---------------------------------------------------------------------------
# Kernel
# ---------------------------------------------------------------------------
def _ffn_kernel(x_ref, w1_ref, b1_ref, w2_ref, b2_ref, g_ref, be_ref, o_ref,
                *, eps, inv_hidden):
    """One (tm, Hp) token tile: LN(relu(x@W1^T + b1)@W2^T + b2 + x)."""
    x = x_ref[...]

    # MXU matmuls in the weights' dtype (bf16 in production), f32 accumulation.
    h = jnp.dot(x.astype(w1_ref.dtype), w1_ref[...],
                preferred_element_type=jnp.float32)
    h = jnp.maximum(h + b1_ref[...], 0.0)                        # bias + ReLU (f32)

    z = jnp.dot(h.astype(w2_ref.dtype), w2_ref[...],
                preferred_element_type=jnp.float32)
    z = z + b2_ref[...]

    # dropout(p=0) is the identity.  Residual + LayerNorm epilogue in f32.
    y = z + x.astype(jnp.float32)

    # Single cross-lane reduction pass: var = E[y^2] - E[y]^2.  Sums run over
    # the padded width Hp, but padded lanes of y are exactly zero, so dividing
    # by the TRUE hidden width (inv_hidden) gives exact statistics.
    mean = jnp.sum(y, axis=-1, keepdims=True) * inv_hidden
    ex2 = jnp.sum(y * y, axis=-1, keepdims=True) * inv_hidden
    var = jnp.maximum(ex2 - mean * mean, 0.0)
    norm = (y - mean) * jax.lax.rsqrt(var + eps)
    o_ref[...] = (norm * g_ref[...] + be_ref[...]).astype(o_ref.dtype)


# ---------------------------------------------------------------------------
# One-time parameter preparation (hoisted out of the hot path)
# ---------------------------------------------------------------------------
def prepare_ffn_params(w1, b1, w2, b2, gamma, beta, *, compute_dtype=None):
    """Transpose Conv1d weights to (in, out), zero-pad channel dims to
    lane-dense multiples of 128, and cast the matmul weights to
    `compute_dtype` (e.g. jnp.bfloat16 for MXU peak).  Biases / LN params are
    kept in f32 because they are applied to f32 accumulators.

    w1: (I, H)   b1: (I,)   w2: (H, I)   b2: (H,)   gamma/beta: (H,)
    """
    I, H = w1.shape
    assert w2.shape == (H, I), "w2 must be (hidden_dim, inner_hidden_dim)"
    Hp = _round_up(H, 128)
    Ip = _round_up(I, 128)
    if compute_dtype is None:
        compute_dtype = w1.dtype

    w1_t = jnp.zeros((Hp, Ip), compute_dtype).at[:H, :I].set(
        jnp.transpose(w1).astype(compute_dtype))
    w2_t = jnp.zeros((Ip, Hp), compute_dtype).at[:I, :H].set(
        jnp.transpose(w2).astype(compute_dtype))
    b1_p = jnp.zeros((1, Ip), jnp.float32).at[:, :I].set(b1.astype(jnp.float32))
    b2_p = jnp.zeros((1, Hp), jnp.float32).at[:, :H].set(b2.astype(jnp.float32))
    g_p = jnp.zeros((1, Hp), jnp.float32).at[:, :H].set(gamma.astype(jnp.float32))
    be_p = jnp.zeros((1, Hp), jnp.float32).at[:, :H].set(beta.astype(jnp.float32))

    return dict(w1_t=w1_t, b1=b1_p, w2_t=w2_t, b2=b2_p, gamma=g_p, beta=be_p,
                hidden=H)


# ---------------------------------------------------------------------------
# pallas_call builder + wrapper
# ---------------------------------------------------------------------------
def _build_ffn_call(*, n_pad, hp, ip, tm, out_dtype, eps, hidden_true,
                    single_buffer_weights, vmem_limit_bytes):
    kernel = functools.partial(_ffn_kernel, eps=eps, inv_hidden=1.0 / hidden_true)

    def invariant_spec(shape):
        # Grid-invariant operands: block index never changes, so on VMEM-tight
        # chips (v7x: 64 MiB) request a single buffer instead of the default
        # double buffer.
        if single_buffer_weights:
            return pl.BlockSpec(shape, lambda i: (0, 0),
                                pipeline_mode=pl.Buffered(1))
        return pl.BlockSpec(shape, lambda i: (0, 0))

    return pl.pallas_call(
        kernel,
        out_shape=jax.ShapeDtypeStruct((n_pad, hp), out_dtype),
        grid_spec=pltpu.PrefetchScalarGridSpec(
            num_scalar_prefetch=0,
            grid=(n_pad // tm,),
            in_specs=[
                pl.BlockSpec((tm, hp), lambda i: (i, 0)),   # x token tile
                invariant_spec((hp, ip)),                   # W1^T
                invariant_spec((1, ip)),                    # b1
                invariant_spec((ip, hp)),                   # W2^T
                invariant_spec((1, hp)),                    # b2
                invariant_spec((1, hp)),                    # gamma
                invariant_spec((1, hp)),                    # beta
            ],
            out_specs=pl.BlockSpec((tm, hp), lambda i: (i, 0)),
        ),
        compiler_params=pltpu.CompilerParams(
            # Token axis is 'parallel' -> shards across the 2 TCs on v7x.
            dimension_semantics=("parallel",),
            vmem_limit_bytes=vmem_limit_bytes,
        ),
    )


def positionwise_ffn(x, params, *, eps=1e-5, tm=256,
                     vmem_limit_bytes=64 * 1024 * 1024,
                     single_buffer_weights=True):
    """x: (B, L, H) in f32 or bf16; params: output of prepare_ffn_params.
    Returns (B, L, H) in x.dtype."""
    B, L, H = x.shape
    assert H == params["hidden"], "hidden_dim mismatch with prepared params"
    Hp, Ip = params["w1_t"].shape

    N = B * L
    # Tile size: multiple of 16 (covers f32 and bf16 sublane packing), never
    # larger than the (rounded-up) token count.
    tm = max(16, min(_round_up(tm, 16), _round_up(N, 16)))
    N_pad = _round_up(N, tm)

    # Zero-pad tokens and hidden lanes once (padded rows/lanes are sliced off
    # below; LayerNorm handles the padding exactly, see kernel comment).
    x_tok = x.reshape(N, H)
    x_pad = jnp.zeros((N_pad, Hp), x.dtype).at[:N, :H].set(x_tok)

    def run(single_buffer):
        call = _build_ffn_call(
            n_pad=N_pad, hp=Hp, ip=Ip, tm=tm, out_dtype=x.dtype, eps=eps,
            hidden_true=H, single_buffer_weights=single_buffer,
            vmem_limit_bytes=int(vmem_limit_bytes))
        return call(x_pad, params["w1_t"], params["b1"], params["w2_t"],
                    params["b2"], params["gamma"], params["beta"])

    if single_buffer_weights:
        try:
            out_pad = jax.block_until_ready(run(True))
        except Exception:
            # pipeline_mode=pl.Buffered(1) not supported by this jax version:
            # fall back to default double-buffering (no extra DMA traffic for
            # grid-invariant operands, just 2x weight VMEM).
            out_pad = jax.block_until_ready(run(False))
    else:
        out_pad = run(False)

    return out_pad[:N, :H].reshape(B, L, H)


# ---------------------------------------------------------------------------
# Pure-JAX reference mirroring the PyTorch forward
# ---------------------------------------------------------------------------
def _reference(x, w1, b1, w2, b2, gamma, beta, eps=1e-5):
    h = jnp.maximum(jnp.einsum("blh,ih->bli", x, w1) + b1, 0.0)
    z = jnp.einsum("bli,hi->blh", h, w2) + b2
    y = z + x
    mean = jnp.mean(y, axis=-1, keepdims=True)
    var = jnp.mean((y - mean) ** 2, axis=-1, keepdims=True)
    return (y - mean) / jnp.sqrt(var + eps) * gamma + beta


if __name__ == "__main__":
    # Shapes implied by the module: x is (batch, seq, hidden_dim);
    # inner_hidden_dim defaults to hidden_dim.
    B, L, H = 2, 8, 32
    I = H

    key = jax.random.PRNGKey(0)
    kx, k1, kb1, k2, kb2 = jax.random.split(key, 5)

    x = jax.random.normal(kx, (B, L, H), dtype=jnp.float32)

    # Conv1d weight shape (out, in, 1) -> (out, in).
    bound1 = 1.0 / (H ** 0.5)
    w1 = jax.random.uniform(k1, (I, H), minval=-bound1, maxval=bound1)
    b1 = jax.random.uniform(kb1, (I,), minval=-bound1, maxval=bound1)
    bound2 = 1.0 / (I ** 0.5)
    w2 = jax.random.uniform(k2, (H, I), minval=-bound2, maxval=bound2)
    b2 = jax.random.uniform(kb2, (H,), minval=-bound2, maxval=bound2)
    gamma = jnp.ones((H,), dtype=jnp.float32)
    beta = jnp.zeros((H,), dtype=jnp.float32)

    ref = _reference(x, w1, b1, w2, b2, gamma, beta)

    # f32 compute path (exactness check).
    params_f32 = prepare_ffn_params(w1, b1, w2, b2, gamma, beta)
    out = jax.block_until_ready(positionwise_ffn(x, params_f32))
    assert out.shape == (B, L, H)
    assert jnp.allclose(out, ref, atol=1e-4, rtol=1e-4), "f32 mismatch vs reference"

    # bf16 MXU path (production config: bf16 weights/inputs, f32 accumulation).
    params_bf16 = prepare_ffn_params(w1, b1, w2, b2, gamma, beta,
                                     compute_dtype=jnp.bfloat16)
    out_bf16 = jax.block_until_ready(positionwise_ffn(x, params_bf16))
    assert out_bf16.shape == (B, L, H)
    assert jnp.allclose(out_bf16, ref, atol=1e-1, rtol=1e-1), "bf16 mismatch vs reference"

    print("KERNEL_OK")
</pallas_src>

<mosaic_0001>
module attributes {stable_mosaic.version = 11 : i64} {
  func.func @_ffn_kernel(%arg0: i32, %arg1: memref<16x128xf32, #tpu.memory_space<vmem>>, %arg2: memref<128x128xf32, #tpu.memory_space<vmem>>, %arg3: memref<1x128xf32, #tpu.memory_space<vmem>>, %arg4: memref<128x128xf32, #tpu.memory_space<vmem>>, %arg5: memref<1x128xf32, #tpu.memory_space<vmem>>, %arg6: memref<1x128xf32, #tpu.memory_space<vmem>>, %arg7: memref<1x128xf32, #tpu.memory_space<vmem>>, %arg8: memref<16x128xf32, #tpu.memory_space<vmem>>) attributes {dimension_semantics = [#tpu.dimension_semantics<parallel>], iteration_bounds = array<i64: 1>, scalar_prefetch = 0 : i64, scratch_operands = 0 : i64, tpu.core_type = #tpu.core_type<tc>, window_params = [{transform_indices = @transform_0, window_bounds = array<i64: 16, 128>}, {pipeline_mode = #tpu.pipeline_mode<synchronous>, transform_indices = @transform_1, window_bounds = array<i64: 128, 128>}, {pipeline_mode = #tpu.pipeline_mode<synchronous>, transform_indices = @transform_2, window_bounds = array<i64: 1, 128>}, {pipeline_mode = #tpu.pipeline_mode<synchronous>, transform_indices = @transform_3, window_bounds = array<i64: 128, 128>}, {pipeline_mode = #tpu.pipeline_mode<synchronous>, transform_indices = @transform_4, window_bounds = array<i64: 1, 128>}, {pipeline_mode = #tpu.pipeline_mode<synchronous>, transform_indices = @transform_5, window_bounds = array<i64: 1, 128>}, {pipeline_mode = #tpu.pipeline_mode<synchronous>, transform_indices = @transform_6, window_bounds = array<i64: 1, 128>}, {transform_indices = @transform_7, window_bounds = array<i64: 16, 128>}]} {
    %c0 = arith.constant 0 : index
    %c0_0 = arith.constant 0 : index
    %0 = vector.load %arg1[%c0, %c0_0] : memref<16x128xf32, #tpu.memory_space<vmem>>, vector<16x128xf32>
    %c0_1 = arith.constant 0 : index
    %c0_2 = arith.constant 0 : index
    %1 = vector.load %arg2[%c0_1, %c0_2] : memref<128x128xf32, #tpu.memory_space<vmem>>, vector<128x128xf32>
    %cst = arith.constant dense<0.000000e+00> : vector<16x128xf32>
    %2 = tpu.matmul %0, %1, %cst {dimension_numbers = #tpu.dot_dimension_numbers<[1], [0], [0], [1], [0, 0, 1, 1], [], []>} : vector<16x128xf32>, vector<128x128xf32>, vector<16x128xf32> -> vector<16x128xf32>
    %c0_3 = arith.constant 0 : index
    %c0_4 = arith.constant 0 : index
    %3 = vector.load %arg3[%c0_3, %c0_4] : memref<1x128xf32, #tpu.memory_space<vmem>>, vector<1x128xf32>
    %4 = vector.broadcast %3 : vector<1x128xf32> to vector<16x128xf32>
    %5 = arith.addf %2, %4 : vector<16x128xf32>
    %cst_5 = arith.constant 0.000000e+00 : f32
    %6 = vector.broadcast %cst_5 : f32 to vector<16x128xf32>
    %7 = arith.maximumf %5, %6 : vector<16x128xf32>
    %c0_6 = arith.constant 0 : index
    %c0_7 = arith.constant 0 : index
    %8 = vector.load %arg4[%c0_6, %c0_7] : memref<128x128xf32, #tpu.memory_space<vmem>>, vector<128x128xf32>
    %cst_8 = arith.constant dense<0.000000e+00> : vector<16x128xf32>
    %9 = tpu.matmul %7, %8, %cst_8 {dimension_numbers = #tpu.dot_dimension_numbers<[1], [0], [0], [1], [0, 0, 1, 1], [], []>} : vector<16x128xf32>, vector<128x128xf32>, vector<16x128xf32> -> vector<16x128xf32>
    %c0_9 = arith.constant 0 : index
    %c0_10 = arith.constant 0 : index
    %10 = vector.load %arg5[%c0_9, %c0_10] : memref<1x128xf32, #tpu.memory_space<vmem>>, vector<1x128xf32>
    %11 = vector.broadcast %10 : vector<1x128xf32> to vector<16x128xf32>
    %12 = arith.addf %9, %11 : vector<16x128xf32>
    %13 = arith.addf %12, %0 : vector<16x128xf32>
    %cst_11 = arith.constant dense<0.000000e+00> : vector<16xf32>
    %14 = vector.multi_reduction <add>, %13, %cst_11 [1] : vector<16x128xf32> to vector<16xf32>
    %15 = vector.shape_cast %14 : vector<16xf32> to vector<16x1xf32>
    %cst_12 = arith.constant 3.125000e-02 : f32
    %16 = vector.broadcast %cst_12 : f32 to vector<16x1xf32>
    %17 = arith.mulf %15, %16 : vector<16x1xf32>
    %18 = arith.mulf %13, %13 : vector<16x128xf32>
    %cst_13 = arith.constant dense<0.000000e+00> : vector<16xf32>
    %19 = vector.multi_reduction <add>, %18, %cst_13 [1] : vector<16x128xf32> to vector<16xf32>
    %20 = vector.shape_cast %19 : vector<16xf32> to vector<16x1xf32>
    %cst_14 = arith.constant 3.125000e-02 : f32
    %21 = vector.broadcast %cst_14 : f32 to vector<16x1xf32>
    %22 = arith.mulf %20, %21 : vector<16x1xf32>
    %23 = arith.mulf %17, %17 : vector<16x1xf32>
    %24 = arith.subf %22, %23 : vector<16x1xf32>
    %cst_15 = arith.constant 0.000000e+00 : f32
    %25 = vector.broadcast %cst_15 : f32 to vector<16x1xf32>
    %26 = arith.maximumf %24, %25 : vector<16x1xf32>
    %27 = vector.broadcast %17 : vector<16x1xf32> to vector<16x128xf32>
    %28 = arith.subf %13, %27 : vector<16x128xf32>
    %cst_16 = arith.constant 9.99999974E-6 : f32
    %29 = vector.broadcast %cst_16 : f32 to vector<16x1xf32>
    %30 = arith.addf %26, %29 : vector<16x1xf32>
    %31 = math.rsqrt %30 : vector<16x1xf32>
    %32 = vector.broadcast %31 : vector<16x1xf32> to vector<16x128xf32>
    %33 = arith.mulf %28, %32 : vector<16x128xf32>
    %c0_17 = arith.constant 0 : index
    %c0_18 = arith.constant 0 : index
    %34 = vector.load %arg6[%c0_17, %c0_18] : memref<1x128xf32, #tpu.memory_space<vmem>>, vector<1x128xf32>
    %35 = vector.broadcast %34 : vector<1x128xf32> to vector<16x128xf32>
    %36 = arith.mulf %33, %35 : vector<16x128xf32>
    %c0_19 = arith.constant 0 : index
    %c0_20 = arith.constant 0 : index
    %37 = vector.load %arg7[%c0_19, %c0_20] : memref<1x128xf32, #tpu.memory_space<vmem>>, vector<1x128xf32>
    %38 = vector.broadcast %37 : vector<1x128xf32> to vector<16x128xf32>
    %39 = arith.addf %36, %38 : vector<16x128xf32>
    %c0_21 = arith.constant 0 : index
    %c0_22 = arith.constant 0 : index
    %40 = vector.load %arg8[%c0_21, %c0_22] : memref<16x128xf32, #tpu.memory_space<vmem>>, vector<16x128xf32>
    tpu.vector_store %arg8[%c0_21, %c0_22], %39 {strides = array<i32>} : memref<16x128xf32, #tpu.memory_space<vmem>>, vector<16x128xf32>,
    return
  }
  func.func @transform_0(%arg0: i32) -> (i32, i32) {
    %c0_i32 = arith.constant 0 : i32
    %c0_i32_0 = arith.constant 0 : i32
    return %arg0, %c0_i32 : i32, i32
  }
  func.func @transform_1(%arg0: i32) -> (i32, i32) {
    %c0_i32 = arith.constant 0 : i32
    %c0_i32_0 = arith.constant 0 : i32
    %c0_i32_1 = arith.constant 0 : i32
    return %c0_i32, %c0_i32_0 : i32, i32
  }
  func.func @transform_2(%arg0: i32) -> (i32, i32) {
    %c0_i32 = arith.constant 0 : i32
    %c0_i32_0 = arith.constant 0 : i32
    %c0_i32_1 = arith.constant 0 : i32
    return %c0_i32, %c0_i32_0 : i32, i32
  }
  func.func @transform_3(%arg0: i32) -> (i32, i32) {
    %c0_i32 = arith.constant 0 : i32
    %c0_i32_0 = arith.constant 0 : i32
    %c0_i32_1 = arith.constant 0 : i32
    return %c0_i32, %c0_i32_0 : i32, i32
  }
  func.func @transform_4(%arg0: i32) -> (i32, i32) {
    %c0_i32 = arith.constant 0 : i32
    %c0_i32_0 = arith.constant 0 : i32
    %c0_i32_1 = arith.constant 0 : i32
    return %c0_i32, %c0_i32_0 : i32, i32
  }
  func.func @transform_5(%arg0: i32) -> (i32, i32) {
    %c0_i32 = arith.constant 0 : i32
    %c0_i32_0 = arith.constant 0 : i32
    %c0_i32_1 = arith.constant 0 : i32
    return %c0_i32, %c0_i32_0 : i32, i32
  }
  func.func @transform_6(%arg0: i32) -> (i32, i32) {
    %c0_i32 = arith.constant 0 : i32
    %c0_i32_0 = arith.constant 0 : i32
    %c0_i32_1 = arith.constant 0 : i32
    return %c0_i32, %c0_i32_0 : i32, i32
  }
  func.func @transform_7(%arg0: i32) -> (i32, i32) {
    %c0_i32 = arith.constant 0 : i32
    %c0_i32_0 = arith.constant 0 : i32
    return %arg0, %c0_i32 : i32, i32
  }
}

module attributes {stable_mosaic.version = 11 : i64} {
  func.func @_ffn_kernel(%arg0: i32, %arg1: memref<16x128xf32, #tpu.memory_space<vmem>>, %arg2: memref<128x128xf32, #tpu.memory_space<vmem>>, %arg3: memref<1x128xf32, #tpu.memory_space<vmem>>, %arg4: memref<128x128xf32, #tpu.memory_space<vmem>>, %arg5: memref<1x128xf32, #tpu.memory_space<vmem>>, %arg6: memref<1x128xf32, #tpu.memory_space<vmem>>, %arg7: memref<1x128xf32, #tpu.memory_space<vmem>>, %arg8: memref<16x128xf32, #tpu.memory_space<vmem>>) attributes {dimension_semantics = [#tpu.dimension_semantics<parallel>], iteration_bounds = array<i64: 1>, scalar_prefetch = 0 : i64, scratch_operands = 0 : i64, tpu.core_type = #tpu.core_type<tc>, window_params = [{transform_indices = @transform_0, window_bounds = array<i64: 16, 128>}, {pipeline_mode = #tpu.pipeline_mode<synchronous>, transform_indices = @transform_1, window_bounds = array<i64: 128, 128>}, {pipeline_mode = #tpu.pipeline_mode<synchronous>, transform_indices = @transform_2, window_bounds = array<i64: 1, 128>}, {pipeline_mode = #tpu.pipeline_mode<synchronous>, transform_indices = @transform_3, window_bounds = array<i64: 128, 128>}, {pipeline_mode = #tpu.pipeline_mode<synchronous>, transform_indices = @transform_4, window_bounds = array<i64: 1, 128>}, {pipeline_mode = #tpu.pipeline_mode<synchronous>, transform_indices = @transform_5, window_bounds = array<i64: 1, 128>}, {pipeline_mode = #tpu.pipeline_mode<synchronous>, transform_indices = @transform_6, window_bounds = array<i64: 1, 128>}, {transform_indices = @transform_7, window_bounds = array<i64: 16, 128>}]} {
    %c0 = arith.constant 0 : index
    %c0_0 = arith.constant 0 : index
    %0 = vector.load %arg1[%c0, %c0_0] : memref<16x128xf32, #tpu.memory_space<vmem>>, vector<16x128xf32>
    %c0_1 = arith.constant 0 : index
    %c0_2 = arith.constant 0 : index
    %1 = vector.load %arg2[%c0_1, %c0_2] : memref<128x128xf32, #tpu.memory_space<vmem>>, vector<128x128xf32>
    %cst = arith.constant dense<0.000000e+00> : vector<16x128xf32>
    %2 = tpu.matmul %0, %1, %cst {dimension_numbers = #tpu.dot_dimension_numbers<[1], [0], [0], [1], [0, 0, 1, 1], [], []>} : vector<16x128xf32>, vector<128x128xf32>, vector<16x128xf32> -> vector<16x128xf32>
    %c0_3 = arith.constant 0 : index
    %c0_4 = arith.constant 0 : index
    %3 = vector.load %arg3[%c0_3, %c0_4] : memref<1x128xf32, #tpu.memory_space<vmem>>, vector<1x128xf32>
    %4 = vector.broadcast %3 : vector<1x128xf32> to vector<16x128xf32>
    %5 = arith.addf %2, %4 : vector<16x128xf32>
    %cst_5 = arith.constant 0.000000e+00 : f32
    %6 = vector.broadcast %cst_5 : f32 to vector<16x128xf32>
    %7 = arith.maximumf %5, %6 : vector<16x128xf32>
    %c0_6 = arith.constant 0 : index
    %c0_7 = arith.constant 0 : index
    %8 = vector.load %arg4[%c0_6, %c0_7] : memref<128x128xf32, #tpu.memory_space<vmem>>, vector<128x128xf32>
    %cst_8 = arith.constant dense<0.000000e+00> : vector<16x128xf32>
    %9 = tpu.matmul %7, %8, %cst_8 {dimension_numbers = #tpu.dot_dimension_numbers<[1], [0], [0], [1], [0, 0, 1, 1], [], []>} : vector<16x128xf32>, vector<128x128xf32>, vector<16x128xf32> -> vector<16x128xf32>
    %c0_9 = arith.constant 0 : index
    %c0_10 = arith.constant 0 : index
    %10 = vector.load %arg5[%c0_9, %c0_10] : memref<1x128xf32, #tpu.memory_space<vmem>>, vector<1x128xf32>
    %11 = vector.broadcast %10 : vector<1x128xf32> to vector<16x128xf32>
    %12 = arith.addf %9, %11 : vector<16x128xf32>
    %13 = arith.addf %12, %0 : vector<16x128xf32>
    %cst_11 = arith.constant dense<0.000000e+00> : vector<16xf32>
    %14 = vector.multi_reduction <add>, %13, %cst_11 [1] : vector<16x128xf32> to vector<16xf32>
    %15 = vector.shape_cast %14 : vector<16xf32> to vector<16x1xf32>
    %cst_12 = arith.constant 3.125000e-02 : f32
    %16 = vector.broadcast %cst_12 : f32 to vector<16x1xf32>
    %17 = arith.mulf %15, %16 : vector<16x1xf32>
    %18 = arith.mulf %13, %13 : vector<16x128xf32>
    %cst_13 = arith.constant dense<0.000000e+00> : vector<16xf32>
    %19 = vector.multi_reduction <add>, %18, %cst_13 [1] : vector<16x128xf32> to vector<16xf32>
    %20 = vector.shape_cast %19 : vector<16xf32> to vector<16x1xf32>
    %cst_14 = arith.constant 3.125000e-02 : f32
    %21 = vector.broadcast %cst_14 : f32 to vector<16x1xf32>
    %22 = arith.mulf %20, %21 : vector<16x1xf32>
    %23 = arith.mulf %17, %17 : vector<16x1xf32>
    %24 = arith.subf %22, %23 : vector<16x1xf32>
    %cst_15 = arith.constant 0.000000e+00 : f32
    %25 = vector.broadcast %cst_15 : f32 to vector<16x1xf32>
    %26 = arith.maximumf %24, %25 : vector<16x1xf32>
    %27 = vector.broadcast %17 : vector<16x1xf32> to vector<16x128xf32>
    %28 = arith.subf %13, %27 : vector<16x128xf32>
    %cst_16 = arith.constant 9.99999974E-6 : f32
    %29 = vector.broadcast %cst_16 : f32 to vector<16x1xf32>
    %30 = arith.addf %26, %29 : vector<16x1xf32>
    %31 = math.rsqrt %30 : vector<16x1xf32>
    %32 = vector.broadcast %31 : vector<16x1xf32> to vector<16x128xf32>
    %33 = arith.mulf %28, %32 : vector<16x128xf32>
    %c0_17 = arith.constant 0 : index
    %c0_18 = arith.constant 0 : index
    %34 = vector.load %arg6[%c0_17, %c0_18] : memref<1x128xf32, #tpu.memory_space<vmem>>, vector<1x128xf32>
    %35 = vector.broadcast %34 : vector<1x128xf32> to vector<16x128xf32>
    %36 = arith.mulf %33, %35 : vector<16x128xf32>
    %c0_19 = arith.constant 0 : index
    %c0_20 = arith.constant 0 : index
    %37 = vector.load %arg7[%c0_19, %c0_20] : memref<1x128xf32, #tpu.memory_space<vmem>>, vector<1x128xf32>
    %38 = vector.broadcast %37 : vector<1x128xf32> to vector<16x128xf32>
    %39 = arith.addf %36, %38 : vector<16x128xf32>
    %c0_21 = arith.constant 0 : index
    %c0_22 = arith.constant 0 : index
    %40 = vector.load %arg8[%c0_21, %c0_22] : memref<16x128xf32, #tpu.memory_space<vmem>>, vector<16x128xf32>
    tpu.vector_store %arg8[%c0_21, %c0_22], %39 {strides = array<i32>} : memref<16x128xf32, #tpu.memory_space<vmem>>, vector<16x128xf32>,
    return
  }
  func.func @transform_0(%arg0: i32) -> (i32, i32) {
    %c0_i32 = arith.constant 0 : i32
    %c0_i32_0 = arith.constant 0 : i32
    return %arg0, %c0_i32 : i32, i32
  }
  func.func @transform_1(%arg0: i32) -> (i32, i32) {
    %c0_i32 = arith.constant 0 : i32
    %c0_i32_0 = arith.constant 0 : i32
    %c0_i32_1 = arith.constant 0 : i32
    return %c0_i32, %c0_i32_0 : i32, i32
  }
  func.func @transform_2(%arg0: i32) -> (i32, i32) {
    %c0_i32 = arith.constant 0 : i32
    %c0_i32_0 = arith.constant 0 : i32
    %c0_i32_1 = arith.constant 0 : i32
    return %c0_i32, %c0_i32_0 : i32, i32
  }
  func.func @transform_3(%arg0: i32) -> (i32, i32) {
    %c0_i32 = arith.constant 0 : i32
    %c0_i32_0 = arith.constant 0 : i32
    %c0_i32_1 = arith.constant 0 : i32
    return %c0_i32, %c0_i32_0 : i32, i32
  }
  func.func @transform_4(%arg0: i32) -> (i32, i32) {
    %c0_i32 = arith.constant 0 : i32
    %c0_i32_0 = arith.constant 0 : i32
    %c0_i32_1 = arith.constant 0 : i32
    return %c0_i32, %c0_i32_0 : i32, i32
  }
  func.func @transform_5(%arg0: i32) -> (i32, i32) {
    %c0_i32 = arith.constant 0 : i32
    %c0_i32_0 = arith.constant 0 : i32
    %c0_i32_1 = arith.constant 0 : i32
    return %c0_i32, %c0_i32_0 : i32, i32
  }
  func.func @transform_6(%arg0: i32) -> (i32, i32) {
    %c0_i32 = arith.constant 0 : i32
    %c0_i32_0 = arith.constant 0 : i32
    %c0_i32_1 = arith.constant 0 : i32
    return %c0_i32, %c0_i32_0 : i32, i32
  }
  func.func @transform_7(%arg0: i32) -> (i32, i32) {
    %c0_i32 = arith.constant 0 : i32
    %c0_i32_0 = arith.constant 0 : i32
    return %arg0, %c0_i32 : i32, i32
  }
}

</mosaic_0001>

<llo_original>
// kernel: tpu_custom_call.1
$region0: #{tpu_custom_call.1}
  #allocation0 [shape = 'u32[]', space=smem, size = 0x4, offset = 0x4, fixed_abs, tag = 'smem constant byte address 0x4 - core index']
  #allocation1 [shape = 'u32[144,128]{1,0:T(1,128)}', space=vmem, size = 0x12000, scoped, tag = 'internal scratch']
  %s0 = inlined_call_operand.hbm [shape: f32[16,128], index: 0, kind: input, shape index: {}]
  %s1 = inlined_call_operand.hbm [shape: f32[128,128], index: 1, kind: input, shape index: {}]
  %s2 = inlined_call_operand.hbm [shape: f32[1,128], index: 2, kind: input, shape index: {}]
  %s3 = inlined_call_operand.hbm [shape: f32[128,128], index: 3, kind: input, shape index: {}]
  %s4 = inlined_call_operand.hbm [shape: f32[1,128], index: 4, kind: input, shape index: {}]
  %s5 = inlined_call_operand.hbm [shape: f32[1,128], index: 5, kind: input, shape index: {}]
  %s6 = inlined_call_operand.hbm [shape: f32[1,128], index: 6, kind: input, shape index: {}]
  %s7 = inlined_call_operand.hbm [shape: f32[16,128], index: 7, kind: output, shape index: {}]
  %s8 = sld [smem:[#allocation0]]
  $region66: #{tpu_custom_call.1} parent=0
    _
  %s10 = ssub.s32 1, %s8
  %s11 = scalar_select 0, %s10, %s8
  $region1: #{tpu_custom_call.1} parent=0
    #allocation2 [shape = 'u8[8192]{0}', space=vmem, size = 0x2000, scoped, tag = 'input window, operand 0, single buffered']
    #allocation3 [shape = 's32[1]{0}', space=sflag, size = 0x4, scoped, tag = 'scoped memory for tpu_custom_call.1']
    #allocation4 [shape = 's32[1]{0}', space=sflag, size = 0x4, scoped, tag = 'scoped memory for tpu_custom_call.1']
    #allocation5 [shape = 'u8[65536]{0}', space=vmem, size = 0x10000, scoped, tag = 'input window, operand 1, single buffered']
    #allocation6 [shape = 's32[1]{0}', space=sflag, size = 0x4, scoped, tag = 'scoped memory for tpu_custom_call.1']
    #allocation7 [shape = 'u8[512]{0}', space=vmem, size = 0x400, scoped, tag = 'input window, operand 2, single buffered']
    #allocation8 [shape = 'u8[65536]{0}', space=vmem, size = 0x10000, scoped, tag = 'input window, operand 3, single buffered']
    #allocation9 [shape = 's32[1]{0}', space=sflag, size = 0x4, scoped, tag = 'scoped memory for tpu_custom_call.1']
    #allocation10 [shape = 'u8[512]{0}', space=vmem, size = 0x400, scoped, tag = 'input window, operand 4, single buffered']
    #allocation11 [shape = 'u8[512]{0}', space=vmem, size = 0x400, scoped, tag = 'input window, operand 5, single buffered']
    #allocation12 [shape = 's32[1]{0}', space=sflag, size = 0x4, scoped, tag = 'scoped memory for tpu_custom_call.1']
    #allocation13 [shape = 'u8[512]{0}', space=vmem, size = 0x400, scoped, tag = 'input window, operand 6, single buffered']
    #allocation14 [shape = 'u8[8192]{0}', space=vmem, size = 0x2000, scoped, tag = 'output window, operand 0, single buffered']
    %12 = vsyncpa [#allocation3], 0
    %13 = vsyncpa [#allocation6], 0
    %14 = vsyncpa [#allocation9], 0
    %15 = vsyncpa [#allocation12], 0
    %16 = vsyncpa [#allocation4], 0
    // Predicated region
    $region2: #{tpu_custom_call.1} parent=1 // pred_check
      _
    $region3: #{tpu_custom_call.1} parent=1 // pred_check_branch
      %18 = sbr.rel (0) target = $region5
    $region4: #{tpu_custom_call.1} parent=1 // pred_region
      %s20 = ssub.s32 256, 256
      %21 = vsyncadd [#allocation3], %s20
      %s22 = sshll.u32 [#allocation2], 4
      %s23 = int_to_ptr.vmem [resolvable:$true] %s22
      %28 = dma.hbm_to_vmem [thread:$0]  %s0, 256, %s23, [#allocation3], 128, 128, 8
    $region5: #{tpu_custom_call.1} parent=1 // pred_fallthru
      _
    // Predicated region
    $region6: #{tpu_custom_call.1} parent=1 // pred_check
      _
    $region7: #{tpu_custom_call.1} parent=1 // pred_check_branch
      %30 = sbr.rel (0) target = $region9
    $region8: #{tpu_custom_call.1} parent=1 // pred_region
      %s32 = ssub.s32 2048, 2048
      %33 = vsyncadd [#allocation6], %s32
      %s34 = sshll.u32 [#allocation5], 4
      %s35 = int_to_ptr.vmem [resolvable:$true] %s34
      %40 = dma.hbm_to_vmem [thread:$0]  %s1, 2048, %s35, [#allocation6], 128, 128, 8
    $region9: #{tpu_custom_call.1} parent=1 // pred_fallthru
      _
    // Predicated region
    $region10: #{tpu_custom_call.1} parent=1 // pred_check
      _
    $region11: #{tpu_custom_call.1} parent=1 // pred_check_branch
      %42 = sbr.rel (0) target = $region13
    $region12: #{tpu_custom_call.1} parent=1 // pred_region
      %s44 = ssub.s32 16, 16
      %45 = vsyncadd [#allocation6], %s44
      %s47 = sshll.u32 [#allocation7], 4
      %s48 = int_to_ptr.vmem [resolvable:$true] %s47
      %50 = dma.hbm_to_vmem [thread:$0]  %s2, 16, %s48, [#allocation6]
    $region13: #{tpu_custom_call.1} parent=1 // pred_fallthru
      _
    // Predicated region
    $region14: #{tpu_custom_call.1} parent=1 // pred_check
      _
    $region15: #{tpu_custom_call.1} parent=1 // pred_check_branch
      %52 = sbr.rel (0) target = $region17
    $region16: #{tpu_custom_call.1} parent=1 // pred_region
      %s54 = ssub.s32 2048, 2048
      %55 = vsyncadd [#allocation9], %s54
      %s56 = sshll.u32 [#allocation8], 4
      %s57 = int_to_ptr.vmem [resolvable:$true] %s56
      %62 = dma.hbm_to_vmem [thread:$0]  %s3, 2048, %s57, [#allocation9], 128, 128, 8
    $region17: #{tpu_custom_call.1} parent=1 // pred_fallthru
      _
    // Predicated region
    $region18: #{tpu_custom_call.1} parent=1 // pred_check
      _
    $region19: #{tpu_custom_call.1} parent=1 // pred_check_branch
      %64 = sbr.rel (0) target = $region21
    $region20: #{tpu_custom_call.1} parent=1 // pred_region
      %s66 = ssub.s32 16, 16
      %67 = vsyncadd [#allocation9], %s66
      %s69 = sshll.u32 [#allocation10], 4
      %s70 = int_to_ptr.vmem [resolvable:$true] %s69
      %72 = dma.hbm_to_vmem [thread:$0]  %s4, 16, %s70, [#allocation9]
    $region21: #{tpu_custom_call.1} parent=1 // pred_fallthru
      _
    // Predicated region
    $region22: #{tpu_custom_call.1} parent=1 // pred_check
      _
    $region23: #{tpu_custom_call.1} parent=1 // pred_check_branch
      %74 = sbr.rel (0) target = $region25
    $region24: #{tpu_custom_call.1} parent=1 // pred_region
      %s76 = ssub.s32 16, 16
      %77 = vsyncadd [#allocation12], %s76
      %s79 = sshll.u32 [#allocation11], 4
      %s80 = int_to_ptr.vmem [resolvable:$true] %s79
      %82 = dma.hbm_to_vmem [thread:$0]  %s5, 16, %s80, [#allocation12]
    $region25: #{tpu_custom_call.1} parent=1 // pred_fallthru
      _
    // Predicated region
    $region26: #{tpu_custom_call.1} parent=1 // pred_check
      _
    $region27: #{tpu_custom_call.1} parent=1 // pred_check_branch
      %84 = sbr.rel (0) target = $region29
    $region28: #{tpu_custom_call.1} parent=1 // pred_region
      %s86 = ssub.s32 16, 16
      %87 = vsyncadd [#allocation12], %s86
      %s89 = sshll.u32 [#allocation13], 4
      %s90 = int_to_ptr.vmem [resolvable:$true] %s89
      %92 = dma.hbm_to_vmem [thread:$0]  %s6, 16, %s90, [#allocation12]
    $region29: #{tpu_custom_call.1} parent=1 // pred_fallthru
      _
    // Predicated region
    $region30: #{tpu_custom_call.1} parent=1 // pred_check
      _
    $region31: #{tpu_custom_call.1} parent=1 // pred_check_branch
      %94 = sbr.rel (0) target = $region33
    $region32: #{tpu_custom_call.1} parent=1 // pred_region
      %95 = dma.done [#allocation3], 256
    $region33: #{tpu_custom_call.1} parent=1 // pred_fallthru
      _
    // Predicated region
    $region34: #{tpu_custom_call.1} parent=1 // pred_check
      _
    $region35: #{tpu_custom_call.1} parent=1 // pred_check_branch
      %97 = sbr.rel (0) target = $region37
    $region36: #{tpu_custom_call.1} parent=1 // pred_region
      %98 = dma.done [#allocation6], 2048
    $region37: #{tpu_custom_call.1} parent=1 // pred_fallthru
      _
    // Predicated region
    $region38: #{tpu_custom_call.1} parent=1 // pred_check
      _
    $region39: #{tpu_custom_call.1} parent=1 // pred_check_branch
      %100 = sbr.rel (0) target = $region41
    $region40: #{tpu_custom_call.1} parent=1 // pred_region
      %101 = dma.done [#allocation6], 16
    $region41: #{tpu_custom_call.1} parent=1 // pred_fallthru
      _
    // Predicated region
    $region42: #{tpu_custom_call.1} parent=1 // pred_check
      _
    $region43: #{tpu_custom_call.1} parent=1 // pred_check_branch
      %103 = sbr.rel (0) target = $region45
    $region44: #{tpu_custom_call.1} parent=1 // pred_region
      %104 = dma.done [#allocation9], 2048
    $region45: #{tpu_custom_call.1} parent=1 // pred_fallthru
      _
    // Predicated region
    $region46: #{tpu_custom_call.1} parent=1 // pred_check
      _
    $region47: #{tpu_custom_call.1} parent=1 // pred_check_branch
      %106 = sbr.rel (0) target = $region49
    $region48: #{tpu_custom_call.1} parent=1 // pred_region
      %107 = dma.done [#allocation9], 16
    $region49: #{tpu_custom_call.1} parent=1 // pred_fallthru
      _
    // Predicated region
    $region50: #{tpu_custom_call.1} parent=1 // pred_check
      _
    $region51: #{tpu_custom_call.1} parent=1 // pred_check_branch
      %109 = sbr.rel (0) target = $region53
    $region52: #{tpu_custom_call.1} parent=1 // pred_region
      %110 = dma.done [#allocation12], 16
    $region53: #{tpu_custom_call.1} parent=1 // pred_fallthru
      _
    // Predicated region
    $region54: #{tpu_custom_call.1} parent=1 // pred_check
      _
    $region55: #{tpu_custom_call.1} parent=1 // pred_check_branch
      %112 = sbr.rel (0) target = $region57
    $region56: #{tpu_custom_call.1} parent=1 // pred_region
      %113 = dma.done [#allocation12], 16
    $region57: #{tpu_custom_call.1} parent=1 // pred_fallthru
      _
    %v114 = vld [vmem:[#allocation2] sm:$0xff]
    %v115 = vld [vmem:[#allocation2 + $0x8] sm:$0xff]
    %v116 = vld [vmem:[#allocation5] sm:$0xff]
    %v117 = vld [vmem:[#allocation5 + $0x8] sm:$0xff]
    %v118 = vld [vmem:[#allocation5 + $0x10] sm:$0xff]
    %v119 = vld [vmem:[#allocation5 + $0x18] sm:$0xff]
    %v120 = vld [vmem:[#allocation5 + $0x20] sm:$0xff]
    %v121 = vld [vmem:[#allocation5 + $0x28] sm:$0xff]
    %v122 = vld [vmem:[#allocation5 + $0x30] sm:$0xff]
    %v123 = vld [vmem:[#allocation5 + $0x38] sm:$0xff]
    %v124 = vld [vmem:[#allocation5 + $0x40] sm:$0xff]
    %v125 = vld [vmem:[#allocation5 + $0x48] sm:$0xff]
    %v126 = vld [vmem:[#allocation5 + $0x50] sm:$0xff]
    %v127 = vld [vmem:[#allocation5 + $0x58] sm:$0xff]
    %v128 = vld [vmem:[#allocation5 + $0x60] sm:$0xff]
    %v129 = vld [vmem:[#allocation5 + $0x68] sm:$0xff]
    %v130 = vld [vmem:[#allocation5 + $0x70] sm:$0xff]
    %v131 = vld [vmem:[#allocation5 + $0x78] sm:$0xff]
    %v132 = vld [vmem:[#allocation7] sm:$0x1]
    %v134 = vlaneseq
    %v135 = vshrl.u32 %v134, 7
    %v136 = vsub.s32 0, %v135
    %v137 = vrot.slane %v132, %v136
    %139 = vmatprep.subr.mxu0 0.0
    %140 = vmatpush1.msra.mxu0 %v116
    %141 = vmatprep.subr.mxu0 0.0
    %142 = vmatpush1.msra.mxu0 %v117
    %143 = vmatprep.subr.mxu0 0.0
    %144 = vmatpush1.msra.mxu0 %v118
    %145 = vmatprep.subr.mxu0 0.0
    %146 = vmatpush1.msra.mxu0 %v119
    %147 = vmatprep.subr.mxu0 0.0
    %148 = vmatpush1.msra.mxu0 %v120
    %149 = vmatprep.subr.mxu0 0.0
    %150 = vmatpush1.msra.mxu0 %v121
    %151 = vmatprep.subr.mxu0 0.0
    %152 = vmatpush1.msra.mxu0 %v122
    %153 = vmatprep.subr.mxu0 0.0
    %154 = vmatpush1.msra.mxu0 %v123
    %155 = vmatprep.subr.mxu0 0.0
    %156 = vmatpush1.msra.mxu0 %v124
    %157 = vmatprep.subr.mxu0 0.0
    %158 = vmatpush1.msra.mxu0 %v125
    %159 = vmatprep.subr.mxu0 0.0
    %160 = vmatpush1.msra.mxu0 %v126
    %161 = vmatprep.subr.mxu0 0.0
    %162 = vmatpush1.msra.mxu0 %v127
    %163 = vmatprep.subr.mxu0 0.0
    %164 = vmatpush1.msra.mxu0 %v128
    %165 = vmatprep.subr.mxu0 0.0
    %166 = vmatpush1.msra.mxu0 %v129
    %167 = vmatprep.subr.mxu0 0.0
    %168 = vmatpush1.msra.mxu0 %v130
    %169 = vmatprep.subr.mxu0 0.0
    %170 = vmatpush1.msra.mxu0 %v131
    %171 = vmatprep.subr.mxu0 0.0
    %172 = vmatpush1.msra.mxu0 0.0
    %173 = vmatprep.subr.mxu0 0.0
    %174 = vmatpush1.msra.mxu0 0.0
    %175 = vmatprep.subr.mxu0 0.0
    %176 = vmatpush1.msra.mxu0 0.0
    %177 = vmatprep.subr.mxu0 0.0
    %178 = vmatpush1.msra.mxu0 0.0
    %179 = vmatprep.subr.mxu0 0.0
    %180 = vmatpush1.msra.mxu0 0.0
    %181 = vmatprep.subr.mxu0 0.0
    %182 = vmatpush1.msra.mxu0 0.0
    %183 = vmatprep.subr.mxu0 0.0
    %184 = vmatpush1.msra.mxu0 0.0
    %185 = vmatprep.subr.mxu0 0.0
    %186 = vmatpush1.msra.mxu0 0.0
    %187 = vmatprep.subr.mxu0 0.0
    %188 = vmatpush1.msra.mxu0 0.0
    %189 = vmatprep.subr.mxu0 0.0
    %190 = vmatpush1.msra.mxu0 0.0
    %191 = vmatprep.subr.mxu0 0.0
    %192 = vmatpush1.msra.mxu0 0.0
    %193 = vmatprep.subr.mxu0 0.0
    %194 = vmatpush1.msra.mxu0 0.0
    %195 = vmatprep.subr.mxu0 0.0
    %196 = vmatpush1.msra.mxu0 0.0
    %197 = vmatprep.subr.mxu0 0.0
    %198 = vmatpush1.msra.mxu0 0.0
    %199 = vmatprep.subr.mxu0 0.0
    %200 = vmatpush1.msra.mxu0 0.0
    %201 = vmatprep.subr.mxu0 0.0
    %202 = vmatpush1.msra.mxu0 0.0
    %203 = vmatprep.mubr.f32.mxu0 0.0
    %204 = vmatmul.mubr.f32.gmra.mrb[0].mxu0 %v114
    %v205 = vpop.f32.mrb[0].mxu0
    %v206 = vadd.f32 %v137, %v205
    %v207 = vpop.f32.mrb[0].mxu0
    %208 = vmatprep.mubr.f32.mxu0 0.0
    %209 = vmatmul.mubr.f32.gmra.mrb[0].mxu0 %v115
    %v210 = vpop.f32.mrb[0].mxu0
    %v211 = vadd.f32 %v137, %v210
    %v212 = vpop.f32.mrb[0].mxu0
    %213 = vdwg.mxu0
    %v214 = vmax.f32 %v206, 0.0
    %v215 = vmax.f32 %v211, 0.0
    %v216 = vld [vmem:[#allocation8] sm:$0xff]
    %v217 = vld [vmem:[#allocation8 + $0x8] sm:$0xff]
    %v218 = vld [vmem:[#allocation8 + $0x10] sm:$0xff]
    %v219 = vld [vmem:[#allocation8 + $0x18] sm:$0xff]
    %v220 = vld [vmem:[#allocation8 + $0x20] sm:$0xff]
    %v221 = vld [vmem:[#allocation8 + $0x28] sm:$0xff]
    %v222 = vld [vmem:[#allocation8 + $0x30] sm:$0xff]
    %v223 = vld [vmem:[#allocation8 + $0x38] sm:$0xff]
    %v224 = vld [vmem:[#allocation8 + $0x40] sm:$0xff]
    %v225 = vld [vmem:[#allocation8 + $0x48] sm:$0xff]
    %v226 = vld [vmem:[#allocation8 + $0x50] sm:$0xff]
    %v227 = vld [vmem:[#allocation8 + $0x58] sm:$0xff]
    %v228 = vld [vmem:[#allocation8 + $0x60] sm:$0xff]
    %v229 = vld [vmem:[#allocation8 + $0x68] sm:$0xff]
    %v230 = vld [vmem:[#allocation8 + $0x70] sm:$0xff]
    %v231 = vld [vmem:[#allocation8 + $0x78] sm:$0xff]
    %v232 = vld [vmem:[#allocation10] sm:$0x1]
    %v234 = vlaneseq
    %v235 = vshrl.u32 %v234, 7
    %v236 = vsub.s32 0, %v235
    %v237 = vrot.slane %v232, %v236
    %239 = vmatprep.subr.mxu0 0.0
    %240 = vmatpush1.msra.mxu0 %v216
    %241 = vmatprep.subr.mxu0 0.0
    %242 = vmatpush1.msra.mxu0 %v217
    %243 = vmatprep.subr.mxu0 0.0
    %244 = vmatpush1.msra.mxu0 %v218
    %245 = vmatprep.subr.mxu0 0.0
    %246 = vmatpush1.msra.mxu0 %v219
    %247 = vmatprep.subr.mxu0 0.0
    %248 = vmatpush1.msra.mxu0 %v220
    %249 = vmatprep.subr.mxu0 0.0
    %250 = vmatpush1.msra.mxu0 %v221
    %251 = vmatprep.subr.mxu0 0.0
    %252 = vmatpush1.msra.mxu0 %v222
    %253 = vmatprep.subr.mxu0 0.0
    %254 = vmatpush1.msra.mxu0 %v223
    %255 = vmatprep.subr.mxu0 0.0
    %256 = vmatpush1.msra.mxu0 %v224
    %257 = vmatprep.subr.mxu0 0.0
    %258 = vmatpush1.msra.mxu0 %v225
    %259 = vmatprep.subr.mxu0 0.0
    %260 = vmatpush1.msra.mxu0 %v226
    %261 = vmatprep.subr.mxu0 0.0
    %262 = vmatpush1.msra.mxu0 %v227
    %263 = vmatprep.subr.mxu0 0.0
    %264 = vmatpush1.msra.mxu0 %v228
    %265 = vmatprep.subr.mxu0 0.0
    %266 = vmatpush1.msra.mxu0 %v229
    %267 = vmatprep.subr.mxu0 0.0
    %268 = vmatpush1.msra.mxu0 %v230
    %269 = vmatprep.subr.mxu0 0.0
    %270 = vmatpush1.msra.mxu0 %v231
    %271 = vmatprep.subr.mxu0 0.0
    %272 = vmatpush1.msra.mxu0 0.0
    %273 = vmatprep.subr.mxu0 0.0
    %274 = vmatpush1.msra.mxu0 0.0
    %275 = vmatprep.subr.mxu0 0.0
    %276 = vmatpush1.msra.mxu0 0.0
    %277 = vmatprep.subr.mxu0 0.0
    %278 = vmatpush1.msra.mxu0 0.0
    %279 = vmatprep.subr.mxu0 0.0
    %280 = vmatpush1.msra.mxu0 0.0
    %281 = vmatprep.subr.mxu0 0.0
    %282 = vmatpush1.msra.mxu0 0.0
    %283 = vmatprep.subr.mxu0 0.0
    %284 = vmatpush1.msra.mxu0 0.0
    %285 = vmatprep.subr.mxu0 0.0
    %286 = vmatpush1.msra.mxu0 0.0
    %287 = vmatprep.subr.mxu0 0.0
    %288 = vmatpush1.msra.mxu0 0.0
    %289 = vmatprep.subr.mxu0 0.0
    %290 = vmatpush1.msra.mxu0 0.0
    %291 = vmatprep.subr.mxu0 0.0
    %292 = vmatpush1.msra.mxu0 0.0
    %293 = vmatprep.subr.mxu0 0.0
    %294 = vmatpush1.msra.mxu0 0.0
    %295 = vmatprep.subr.mxu0 0.0
    %296 = vmatpush1.msra.mxu0 0.0
    %297 = vmatprep.subr.mxu0 0.0
    %298 = vmatpush1.msra.mxu0 0.0
    %299 = vmatprep.subr.mxu0 0.0
    %300 = vmatpush1.msra.mxu0 0.0
    %301 = vmatprep.subr.mxu0 0.0
    %302 = vmatpush1.msra.mxu0 0.0
    %303 = vmatprep.mubr.f32.mxu0 0.0
    %304 = vmatmul.mubr.f32.gmra.mrb[0].mxu0 %v214
    %v305 = vpop.f32.mrb[0].mxu0
    %v306 = vadd.f32 %v237, %v305
    %v307 = vpop.f32.mrb[0].mxu0
    %308 = vmatprep.mubr.f32.mxu0 0.0
    %309 = vmatmul.mubr.f32.gmra.mrb[0].mxu0 %v215
    %v310 = vpop.f32.mrb[0].mxu0
    %v311 = vadd.f32 %v237, %v310
    %v312 = vpop.f32.mrb[0].mxu0
    %313 = vdwg.mxu0
    %v314 = vadd.f32 %v306, %v114
    %v315 = vadd.f32 %v311, %v115
    %316 = vadd.xlane.f32.xlu0 %v314
    %v317 = vpop.xlane.xlu0 %316
    %318 = vadd.xlane.f32.xlu0 %v315
    %v319 = vpop.xlane.xlu0 %318
    %v320 = vmul.f32 %v317, 0.03125
    %v321 = vmul.f32 %v319, 0.03125
    %v322 = vmul.f32 %v314, %v314
    %v323 = vmul.f32 %v315, %v315
    %324 = vadd.xlane.f32.xlu0 %v322
    %v325 = vpop.xlane.xlu0 %324
    %326 = vadd.xlane.f32.xlu0 %v323
    %v327 = vpop.xlane.xlu0 %326
    %v328 = vmul.f32 %v325, 0.03125
    %v329 = vmul.f32 %v327, 0.03125
    %v330 = vmul.f32 %v320, %v320
    %v331 = vmul.f32 %v321, %v321
    %v332 = vsub.f32 %v328, %v330
    %v333 = vsub.f32 %v329, %v331
    %v334 = vmax.f32 %v332, 0.0
    %v335 = vmax.f32 %v333, 0.0
    %v336 = vsub.f32 %v314, %v320
    %v337 = vsub.f32 %v315, %v321
    %v338 = vadd.f32 %v334, 1e-05
    %v339 = vadd.f32 %v335, 1e-05
    %v340 = vrsqrt.pop %v338
    %v341 = vrsqrt.pop %v339
    %v342 = vmul.f32 %v336, %v340
    %v343 = vmul.f32 %v337, %v341
    %v344 = vld [vmem:[#allocation11] sm:$0x1]
    %v346 = vlaneseq
    %v347 = vshrl.u32 %v346, 7
    %v348 = vsub.s32 0, %v347
    %v349 = vrot.slane %v344, %v348
    %v351 = vmul.f32 %v342, %v349
    %v352 = vmul.f32 %v343, %v349
    %v353 = vld [vmem:[#allocation13] sm:$0x1]
    %v355 = vlaneseq
    %v356 = vshrl.u32 %v355, 7
    %v357 = vsub.s32 0, %v356
    %v358 = vrot.slane %v353, %v357
    %v360 = vadd.f32 %v351, %v358
    %v361 = vadd.f32 %v352, %v358
    %362 = vst [vmem:[#allocation14] sm:$0xff] %v360
    %363 = vst [vmem:[#allocation14 + $0x8] sm:$0xff] %v361
    // Predicated region
    $region58: #{tpu_custom_call.1} parent=1 // pred_check
      _
    $region59: #{tpu_custom_call.1} parent=1 // pred_check_branch
      %365 = sbr.rel (0) target = $region61
    $region60: #{tpu_custom_call.1} parent=1 // pred_region
      %s367 = ssub.s32 256, 256
      %368 = vsyncadd [#allocation4], %s367
      %s369 = sshll.u32 [#allocation14], 4
      %s370 = int_to_ptr.vmem [resolvable:$true] %s369
      %375 = dma.vmem_to_hbm [thread:$0]  %s370, 256, %s7, [#allocation4], 128, 128, 8
    $region61: #{tpu_custom_call.1} parent=1 // pred_fallthru
      _
    // Predicated region
    $region62: #{tpu_custom_call.1} parent=1 // pred_check
      _
    $region63: #{tpu_custom_call.1} parent=1 // pred_check_branch
      %377 = sbr.rel (0) target = $region65
    $region64: #{tpu_custom_call.1} parent=1 // pred_region
      %378 = dma.done [#allocation4], 256
    $region65: #{tpu_custom_call.1} parent=1 // pred_fallthru
      _
    %379 = vsyncpa [#allocation3], 1
    %380 = vsyncpa [#allocation6], 1
    %381 = vsyncpa [#allocation9], 1
    %382 = vsyncpa [#allocation12], 1
    %383 = vsyncpa [#allocation4], 1

// kernel: tpu_custom_call.1
$region0: #{tpu_custom_call.1}
  #allocation0 [shape = 'u32[]', space=smem, size = 0x4, offset = 0x4, fixed_abs, tag = 'smem constant byte address 0x4 - core index']
  #allocation1 [shape = 'u32[144,128]{1,0:T(1,128)}', space=vmem, size = 0x12000, scoped, tag = 'internal scratch']
  %s0 = inlined_call_operand.hbm [shape: f32[16,128], index: 0, kind: input, shape index: {}]
  %s1 = inlined_call_operand.hbm [shape: f32[128,128], index: 1, kind: input, shape index: {}]
  %s2 = inlined_call_operand.hbm [shape: f32[1,128], index: 2, kind: input, shape index: {}]
  %s3 = inlined_call_operand.hbm [shape: f32[128,128], index: 3, kind: input, shape index: {}]
  %s4 = inlined_call_operand.hbm [shape: f32[1,128], index: 4, kind: input, shape index: {}]
  %s5 = inlined_call_operand.hbm [shape: f32[1,128], index: 5, kind: input, shape index: {}]
  %s6 = inlined_call_operand.hbm [shape: f32[1,128], index: 6, kind: input, shape index: {}]
  %s7 = inlined_call_operand.hbm [shape: f32[16,128], index: 7, kind: output, shape index: {}]
  %s8 = sld [smem:[#allocation0]]
  $region66: #{tpu_custom_call.1} parent=0
    _
  %s10 = ssub.s32 1, %s8
  %s11 = scalar_select 0, %s10, %s8
  $region1: #{tpu_custom_call.1} parent=0
    #allocation2 [shape = 'u8[8192]{0}', space=vmem, size = 0x2000, scoped, tag = 'input window, operand 0, single buffered']
    #allocation3 [shape = 's32[1]{0}', space=sflag, size = 0x4, scoped, tag = 'scoped memory for tpu_custom_call.1']
    #allocation4 [shape = 's32[1]{0}', space=sflag, size = 0x4, scoped, tag = 'scoped memory for tpu_custom_call.1']
    #allocation5 [shape = 'u8[65536]{0}', space=vmem, size = 0x10000, scoped, tag = 'input window, operand 1, single buffered']
    #allocation6 [shape = 's32[1]{0}', space=sflag, size = 0x4, scoped, tag = 'scoped memory for tpu_custom_call.1']
    #allocation7 [shape = 'u8[512]{0}', space=vmem, size = 0x400, scoped, tag = 'input window, operand 2, single buffered']
    #allocation8 [shape = 'u8[65536]{0}', space=vmem, size = 0x10000, scoped, tag = 'input window, operand 3, single buffered']
    #allocation9 [shape = 's32[1]{0}', space=sflag, size = 0x4, scoped, tag = 'scoped memory for tpu_custom_call.1']
    #allocation10 [shape = 'u8[512]{0}', space=vmem, size = 0x400, scoped, tag = 'input window, operand 4, single buffered']
    #allocation11 [shape = 'u8[512]{0}', space=vmem, size = 0x400, scoped, tag = 'input window, operand 5, single buffered']
    #allocation12 [shape = 's32[1]{0}', space=sflag, size = 0x4, scoped, tag = 'scoped memory for tpu_custom_call.1']
    #allocation13 [shape = 'u8[512]{0}', space=vmem, size = 0x400, scoped, tag = 'input window, operand 6, single buffered']
    #allocation14 [shape = 'u8[8192]{0}', space=vmem, size = 0x2000, scoped, tag = 'output window, operand 0, single buffered']
    %12 = vsyncpa [#allocation3], 0
    %13 = vsyncpa [#allocation6], 0
    %14 = vsyncpa [#allocation9], 0
    %15 = vsyncpa [#allocation12], 0
    %16 = vsyncpa [#allocation4], 0
    // Predicated region
    $region2: #{tpu_custom_call.1} parent=1 // pred_check
      _
    $region3: #{tpu_custom_call.1} parent=1 // pred_check_branch
      %18 = sbr.rel (0) target = $region5
    $region4: #{tpu_custom_call.1} parent=1 // pred_region
      %s20 = ssub.s32 256, 256
      %21 = vsyncadd [#allocation3], %s20
      %s22 = sshll.u32 [#allocation2], 4
      %s23 = int_to_ptr.vmem [resolvable:$true] %s22
      %28 = dma.hbm_to_vmem [thread:$0]  %s0, 256, %s23, [#allocation3], 128, 128, 8
    $region5: #{tpu_custom_call.1} parent=1 // pred_fallthru
      _
    // Predicated region
    $region6: #{tpu_custom_call.1} parent=1 // pred_check
      _
    $region7: #{tpu_custom_call.1} parent=1 // pred_check_branch
      %30 = sbr.rel (0) target = $region9
    $region8: #{tpu_custom_call.1} parent=1 // pred_region
      %s32 = ssub.s32 2048, 2048
      %33 = vsyncadd [#allocation6], %s32
      %s34 = sshll.u32 [#allocation5], 4
      %s35 = int_to_ptr.vmem [resolvable:$true] %s34
      %40 = dma.hbm_to_vmem [thread:$0]  %s1, 2048, %s35, [#allocation6], 128, 128, 8
    $region9: #{tpu_custom_call.1} parent=1 // pred_fallthru
      _
    // Predicated region
    $region10: #{tpu_custom_call.1} parent=1 // pred_check
      _
    $region11: #{tpu_custom_call.1} parent=1 // pred_check_branch
      %42 = sbr.rel (0) target = $region13
    $region12: #{tpu_custom_call.1} parent=1 // pred_region
      %s44 = ssub.s32 16, 16
      %45 = vsyncadd [#allocation6], %s44
      %s47 = sshll.u32 [#allocation7], 4
      %s48 = int_to_ptr.vmem [resolvable:$true] %s47
      %50 = dma.hbm_to_vmem [thread:$0]  %s2, 16, %s48, [#allocation6]
    $region13: #{tpu_custom_call.1} parent=1 // pred_fallthru
      _
    // Predicated region
    $region14: #{tpu_custom_call.1} parent=1 // pred_check
      _
    $region15: #{tpu_custom_call.1} parent=1 // pred_check_branch
      %52 = sbr.rel (0) target = $region17
    $region16: #{tpu_custom_call.1} parent=1 // pred_region
      %s54 = ssub.s32 2048, 2048
      %55 = vsyncadd [#allocation9], %s54
      %s56 = sshll.u32 [#allocation8], 4
      %s57 = int_to_ptr.vmem [resolvable:$true] %s56
      %62 = dma.hbm_to_vmem [thread:$0]  %s3, 2048, %s57, [#allocation9], 128, 128, 8
    $region17: #{tpu_custom_call.1} parent=1 // pred_fallthru
      _
    // Predicated region
    $region18: #{tpu_custom_call.1} parent=1 // pred_check
      _
    $region19: #{tpu_custom_call.1} parent=1 // pred_check_branch
      %64 = sbr.rel (0) target = $region21
    $region20: #{tpu_custom_call.1} parent=1 // pred_region
      %s66 = ssub.s32 16, 16
      %67 = vsyncadd [#allocation9], %s66
      %s69 = sshll.u32 [#allocation10], 4
      %s70 = int_to_ptr.vmem [resolvable:$true] %s69
      %72 = dma.hbm_to_vmem [thread:$0]  %s4, 16, %s70, [#allocation9]
    $region21: #{tpu_custom_call.1} parent=1 // pred_fallthru
      _
    // Predicated region
    $region22: #{tpu_custom_call.1} parent=1 // pred_check
      _
    $region23: #{tpu_custom_call.1} parent=1 // pred_check_branch
      %74 = sbr.rel (0) target = $region25
    $region24: #{tpu_custom_call.1} parent=1 // pred_region
      %s76 = ssub.s32 16, 16
      %77 = vsyncadd [#allocation12], %s76
      %s79 = sshll.u32 [#allocation11], 4
      %s80 = int_to_ptr.vmem [resolvable:$true] %s79
      %82 = dma.hbm_to_vmem [thread:$0]  %s5, 16, %s80, [#allocation12]
    $region25: #{tpu_custom_call.1} parent=1 // pred_fallthru
      _
    // Predicated region
    $region26: #{tpu_custom_call.1} parent=1 // pred_check
      _
    $region27: #{tpu_custom_call.1} parent=1 // pred_check_branch
      %84 = sbr.rel (0) target = $region29
    $region28: #{tpu_custom_call.1} parent=1 // pred_region
      %s86 = ssub.s32 16, 16
      %87 = vsyncadd [#allocation12], %s86
      %s89 = sshll.u32 [#allocation13], 4
      %s90 = int_to_ptr.vmem [resolvable:$true] %s89
      %92 = dma.hbm_to_vmem [thread:$0]  %s6, 16, %s90, [#allocation12]
    $region29: #{tpu_custom_call.1} parent=1 // pred_fallthru
      _
    // Predicated region
    $region30: #{tpu_custom_call.1} parent=1 // pred_check
      _
    $region31: #{tpu_custom_call.1} parent=1 // pred_check_branch
      %94 = sbr.rel (0) target = $region33
    $region32: #{tpu_custom_call.1} parent=1 // pred_region
      %95 = dma.done [#allocation3], 256
    $region33: #{tpu_custom_call.1} parent=1 // pred_fallthru
      _
    // Predicated region
    $region34: #{tpu_custom_call.1} parent=1 // pred_check
      _
    $region35: #{tpu_custom_call.1} parent=1 // pred_check_branch
      %97 = sbr.rel (0) target = $region37
    $region36: #{tpu_custom_call.1} parent=1 // pred_region
      %98 = dma.done [#allocation6], 2048
    $region37: #{tpu_custom_call.1} parent=1 // pred_fallthru
      _
    // Predicated region
    $region38: #{tpu_custom_call.1} parent=1 // pred_check
      _
    $region39: #{tpu_custom_call.1} parent=1 // pred_check_branch
      %100 = sbr.rel (0) target = $region41
    $region40: #{tpu_custom_call.1} parent=1 // pred_region
      %101 = dma.done [#allocation6], 16
    $region41: #{tpu_custom_call.1} parent=1 // pred_fallthru
      _
    // Predicated region
    $region42: #{tpu_custom_call.1} parent=1 // pred_check
      _
    $region43: #{tpu_custom_call.1} parent=1 // pred_check_branch
      %103 = sbr.rel (0) target = $region45
    $region44: #{tpu_custom_call.1} parent=1 // pred_region
      %104 = dma.done [#allocation9], 2048
    $region45: #{tpu_custom_call.1} parent=1 // pred_fallthru
      _
    // Predicated region
    $region46: #{tpu_custom_call.1} parent=1 // pred_check
      _
    $region47: #{tpu_custom_call.1} parent=1 // pred_check_branch
      %106 = sbr.rel (0) target = $region49
    $region48: #{tpu_custom_call.1} parent=1 // pred_region
      %107 = dma.done [#allocation9], 16
    $region49: #{tpu_custom_call.1} parent=1 // pred_fallthru
      _
    // Predicated region
    $region50: #{tpu_custom_call.1} parent=1 // pred_check
      _
    $region51: #{tpu_custom_call.1} parent=1 // pred_check_branch
      %109 = sbr.rel (0) target = $region53
    $region52: #{tpu_custom_call.1} parent=1 // pred_region
      %110 = dma.done [#allocation12], 16
    $region53: #{tpu_custom_call.1} parent=1 // pred_fallthru
      _
    // Predicated region
    $region54: #{tpu_custom_call.1} parent=1 // pred_check
      _
    $region55: #{tpu_custom_call.1} parent=1 // pred_check_branch
      %112 = sbr.rel (0) target = $region57
    $region56: #{tpu_custom_call.1} parent=1 // pred_region
      %113 = dma.done [#allocation12], 16
    $region57: #{tpu_custom_call.1} parent=1 // pred_fallthru
      _
    %v114 = vld [vmem:[#allocation2] sm:$0xff]
    %v115 = vld [vmem:[#allocation2 + $0x8] sm:$0xff]
    %v116 = vld [vmem:[#allocation5] sm:$0xff]
    %v117 = vld [vmem:[#allocation5 + $0x8] sm:$0xff]
    %v118 = vld [vmem:[#allocation5 + $0x10] sm:$0xff]
    %v119 = vld [vmem:[#allocation5 + $0x18] sm:$0xff]
    %v120 = vld [vmem:[#allocation5 + $0x20] sm:$0xff]
    %v121 = vld [vmem:[#allocation5 + $0x28] sm:$0xff]
    %v122 = vld [vmem:[#allocation5 + $0x30] sm:$0xff]
    %v123 = vld [vmem:[#allocation5 + $0x38] sm:$0xff]
    %v124 = vld [vmem:[#allocation5 + $0x40] sm:$0xff]
    %v125 = vld [vmem:[#allocation5 + $0x48] sm:$0xff]
    %v126 = vld [vmem:[#allocation5 + $0x50] sm:$0xff]
    %v127 = vld [vmem:[#allocation5 + $0x58] sm:$0xff]
    %v128 = vld [vmem:[#allocation5 + $0x60] sm:$0xff]
    %v129 = vld [vmem:[#allocation5 + $0x68] sm:$0xff]
    %v130 = vld [vmem:[#allocation5 + $0x70] sm:$0xff]
    %v131 = vld [vmem:[#allocation5 + $0x78] sm:$0xff]
    %v132 = vld [vmem:[#allocation7] sm:$0x1]
    %v134 = vlaneseq
    %v135 = vshrl.u32 %v134, 7
    %v136 = vsub.s32 0, %v135
    %v137 = vrot.slane %v132, %v136
    %139 = vmatprep.subr.mxu0 0.0
    %140 = vmatpush1.msra.mxu0 %v116
    %141 = vmatprep.subr.mxu0 0.0
    %142 = vmatpush1.msra.mxu0 %v117
    %143 = vmatprep.subr.mxu0 0.0
    %144 = vmatpush1.msra.mxu0 %v118
    %145 = vmatprep.subr.mxu0 0.0
    %146 = vmatpush1.msra.mxu0 %v119
    %147 = vmatprep.subr.mxu0 0.0
    %148 = vmatpush1.msra.mxu0 %v120
    %149 = vmatprep.subr.mxu0 0.0
    %150 = vmatpush1.msra.mxu0 %v121
    %151 = vmatprep.subr.mxu0 0.0
    %152 = vmatpush1.msra.mxu0 %v122
    %153 = vmatprep.subr.mxu0 0.0
    %154 = vmatpush1.msra.mxu0 %v123
    %155 = vmatprep.subr.mxu0 0.0
    %156 = vmatpush1.msra.mxu0 %v124
    %157 = vmatprep.subr.mxu0 0.0
    %158 = vmatpush1.msra.mxu0 %v125
    %159 = vmatprep.subr.mxu0 0.0
    %160 = vmatpush1.msra.mxu0 %v126
    %161 = vmatprep.subr.mxu0 0.0
    %162 = vmatpush1.msra.mxu0 %v127
    %163 = vmatprep.subr.mxu0 0.0
    %164 = vmatpush1.msra.mxu0 %v128
    %165 = vmatprep.subr.mxu0 0.0
    %166 = vmatpush1.msra.mxu0 %v129
    %167 = vmatprep.subr.mxu0 0.0
    %168 = vmatpush1.msra.mxu0 %v130
    %169 = vmatprep.subr.mxu0 0.0
    %170 = vmatpush1.msra.mxu0 %v131
    %171 = vmatprep.subr.mxu0 0.0
    %172 = vmatpush1.msra.mxu0 0.0
    %173 = vmatprep.subr.mxu0 0.0
    %174 = vmatpush1.msra.mxu0 0.0
    %175 = vmatprep.subr.mxu0 0.0
    %176 = vmatpush1.msra.mxu0 0.0
    %177 = vmatprep.subr.mxu0 0.0
    %178 = vmatpush1.msra.mxu0 0.0
    %179 = vmatprep.subr.mxu0 0.0
    %180 = vmatpush1.msra.mxu0 0.0
    %181 = vmatprep.subr.mxu0 0.0
    %182 = vmatpush1.msra.mxu0 0.0
    %183 = vmatprep.subr.mxu0 0.0
    %184 = vmatpush1.msra.mxu0 0.0
    %185 = vmatprep.subr.mxu0 0.0
    %186 = vmatpush1.msra.mxu0 0.0
    %187 = vmatprep.subr.mxu0 0.0
    %188 = vmatpush1.msra.mxu0 0.0
    %189 = vmatprep.subr.mxu0 0.0
    %190 = vmatpush1.msra.mxu0 0.0
    %191 = vmatprep.subr.mxu0 0.0
    %192 = vmatpush1.msra.mxu0 0.0
    %193 = vmatprep.subr.mxu0 0.0
    %194 = vmatpush1.msra.mxu0 0.0
    %195 = vmatprep.subr.mxu0 0.0
    %196 = vmatpush1.msra.mxu0 0.0
    %197 = vmatprep.subr.mxu0 0.0
    %198 = vmatpush1.msra.mxu0 0.0
    %199 = vmatprep.subr.mxu0 0.0
    %200 = vmatpush1.msra.mxu0 0.0
    %201 = vmatprep.subr.mxu0 0.0
    %202 = vmatpush1.msra.mxu0 0.0
    %203 = vmatprep.mubr.f32.mxu0 0.0
    %204 = vmatmul.mubr.f32.gmra.mrb[0].mxu0 %v114
    %v205 = vpop.f32.mrb[0].mxu0
    %v206 = vadd.f32 %v137, %v205
    %v207 = vpop.f32.mrb[0].mxu0
    %208 = vmatprep.mubr.f32.mxu0 0.0
    %209 = vmatmul.mubr.f32.gmra.mrb[0].mxu0 %v115
    %v210 = vpop.f32.mrb[0].mxu0
    %v211 = vadd.f32 %v137, %v210
    %v212 = vpop.f32.mrb[0].mxu0
    %213 = vdwg.mxu0
    %v214 = vmax.f32 %v206, 0.0
    %v215 = vmax.f32 %v211, 0.0
    %v216 = vld [vmem:[#allocation8] sm:$0xff]
    %v217 = vld [vmem:[#allocation8 + $0x8] sm:$0xff]
    %v218 = vld [vmem:[#allocation8 + $0x10] sm:$0xff]
    %v219 = vld [vmem:[#allocation8 + $0x18] sm:$0xff]
    %v220 = vld [vmem:[#allocation8 + $0x20] sm:$0xff]
    %v221 = vld [vmem:[#allocation8 + $0x28] sm:$0xff]
    %v222 = vld [vmem:[#allocation8 + $0x30] sm:$0xff]
    %v223 = vld [vmem:[#allocation8 + $0x38] sm:$0xff]
    %v224 = vld [vmem:[#allocation8 + $0x40] sm:$0xff]
    %v225 = vld [vmem:[#allocation8 + $0x48] sm:$0xff]
    %v226 = vld [vmem:[#allocation8 + $0x50] sm:$0xff]
    %v227 = vld [vmem:[#allocation8 + $0x58] sm:$0xff]
    %v228 = vld [vmem:[#allocation8 + $0x60] sm:$0xff]
    %v229 = vld [vmem:[#allocation8 + $0x68] sm:$0xff]
    %v230 = vld [vmem:[#allocation8 + $0x70] sm:$0xff]
    %v231 = vld [vmem:[#allocation8 + $0x78] sm:$0xff]
    %v232 = vld [vmem:[#allocation10] sm:$0x1]
    %v234 = vlaneseq
    %v235 = vshrl.u32 %v234, 7
    %v236 = vsub.s32 0, %v235
    %v237 = vrot.slane %v232, %v236
    %239 = vmatprep.subr.mxu0 0.0
    %240 = vmatpush1.msra.mxu0 %v216
    %241 = vmatprep.subr.mxu0 0.0
    %242 = vmatpush1.msra.mxu0 %v217
    %243 = vmatprep.subr.mxu0 0.0
    %244 = vmatpush1.msra.mxu0 %v218
    %245 = vmatprep.subr.mxu0 0.0
    %246 = vmatpush1.msra.mxu0 %v219
    %247 = vmatprep.subr.mxu0 0.0
    %248 = vmatpush1.msra.mxu0 %v220
    %249 = vmatprep.subr.mxu0 0.0
    %250 = vmatpush1.msra.mxu0 %v221
    %251 = vmatprep.subr.mxu0 0.0
    %252 = vmatpush1.msra.mxu0 %v222
    %253 = vmatprep.subr.mxu0 0.0
    %254 = vmatpush1.msra.mxu0 %v223
    %255 = vmatprep.subr.mxu0 0.0
    %256 = vmatpush1.msra.mxu0 %v224
    %257 = vmatprep.subr.mxu0 0.0
    %258 = vmatpush1.msra.mxu0 %v225
    %259 = vmatprep.subr.mxu0 0.0
    %260 = vmatpush1.msra.mxu0 %v226
    %261 = vmatprep.subr.mxu0 0.0
    %262 = vmatpush1.msra.mxu0 %v227
    %263 = vmatprep.subr.mxu0 0.0
    %264 = vmatpush1.msra.mxu0 %v228
    %265 = vmatprep.subr.mxu0 0.0
    %266 = vmatpush1.msra.mxu0 %v229
    %267 = vmatprep.subr.mxu0 0.0
    %268 = vmatpush1.msra.mxu0 %v230
    %269 = vmatprep.subr.mxu0 0.0
    %270 = vmatpush1.msra.mxu0 %v231
    %271 = vmatprep.subr.mxu0 0.0
    %272 = vmatpush1.msra.mxu0 0.0
    %273 = vmatprep.subr.mxu0 0.0
    %274 = vmatpush1.msra.mxu0 0.0
    %275 = vmatprep.subr.mxu0 0.0
    %276 = vmatpush1.msra.mxu0 0.0
    %277 = vmatprep.subr.mxu0 0.0
    %278 = vmatpush1.msra.mxu0 0.0
    %279 = vmatprep.subr.mxu0 0.0
    %280 = vmatpush1.msra.mxu0 0.0
    %281 = vmatprep.subr.mxu0 0.0
    %282 = vmatpush1.msra.mxu0 0.0
    %283 = vmatprep.subr.mxu0 0.0
    %284 = vmatpush1.msra.mxu0 0.0
    %285 = vmatprep.subr.mxu0 0.0
    %286 = vmatpush1.msra.mxu0 0.0
    %287 = vmatprep.subr.mxu0 0.0
    %288 = vmatpush1.msra.mxu0 0.0
    %289 = vmatprep.subr.mxu0 0.0
    %290 = vmatpush1.msra.mxu0 0.0
    %291 = vmatprep.subr.mxu0 0.0
    %292 = vmatpush1.msra.mxu0 0.0
    %293 = vmatprep.subr.mxu0 0.0
    %294 = vmatpush1.msra.mxu0 0.0
    %295 = vmatprep.subr.mxu0 0.0
    %296 = vmatpush1.msra.mxu0 0.0
    %297 = vmatprep.subr.mxu0 0.0
    %298 = vmatpush1.msra.mxu0 0.0
    %299 = vmatprep.subr.mxu0 0.0
    %300 = vmatpush1.msra.mxu0 0.0
    %301 = vmatprep.subr.mxu0 0.0
    %302 = vmatpush1.msra.mxu0 0.0
    %303 = vmatprep.mubr.f32.mxu0 0.0
    %304 = vmatmul.mubr.f32.gmra.mrb[0].mxu0 %v214
    %v305 = vpop.f32.mrb[0].mxu0
    %v306 = vadd.f32 %v237, %v305
    %v307 = vpop.f32.mrb[0].mxu0
    %308 = vmatprep.mubr.f32.mxu0 0.0
    %309 = vmatmul.mubr.f32.gmra.mrb[0].mxu0 %v215
    %v310 = vpop.f32.mrb[0].mxu0
    %v311 = vadd.f32 %v237, %v310
    %v312 = vpop.f32.mrb[0].mxu0
    %313 = vdwg.mxu0
    %v314 = vadd.f32 %v306, %v114
    %v315 = vadd.f32 %v311, %v115
    %316 = vadd.xlane.f32.xlu0 %v314
    %v317 = vpop.xlane.xlu0 %316
    %318 = vadd.xlane.f32.xlu0 %v315
    %v319 = vpop.xlane.xlu0 %318
    %v320 = vmul.f32 %v317, 0.03125
    %v321 = vmul.f32 %v319, 0.03125
    %v322 = vmul.f32 %v314, %v314
    %v323 = vmul.f32 %v315, %v315
    %324 = vadd.xlane.f32.xlu0 %v322
    %v325 = vpop.xlane.xlu0 %324
    %326 = vadd.xlane.f32.xlu0 %v323
    %v327 = vpop.xlane.xlu0 %326
    %v328 = vmul.f32 %v325, 0.03125
    %v329 = vmul.f32 %v327, 0.03125
    %v330 = vmul.f32 %v320, %v320
    %v331 = vmul.f32 %v321, %v321
    %v332 = vsub.f32 %v328, %v330
    %v333 = vsub.f32 %v329, %v331
    %v334 = vmax.f32 %v332, 0.0
    %v335 = vmax.f32 %v333, 0.0
    %v336 = vsub.f32 %v314, %v320
    %v337 = vsub.f32 %v315, %v321
    %v338 = vadd.f32 %v334, 1e-05
    %v339 = vadd.f32 %v335, 1e-05
    %v340 = vrsqrt.pop %v338
    %v341 = vrsqrt.pop %v339
    %v342 = vmul.f32 %v336, %v340
    %v343 = vmul.f32 %v337, %v341
    %v344 = vld [vmem:[#allocation11] sm:$0x1]
    %v346 = vlaneseq
    %v347 = vshrl.u32 %v346, 7
    %v348 = vsub.s32 0, %v347
    %v349 = vrot.slane %v344, %v348
    %v351 = vmul.f32 %v342, %v349
    %v352 = vmul.f32 %v343, %v349
    %v353 = vld [vmem:[#allocation13] sm:$0x1]
    %v355 = vlaneseq
    %v356 = vshrl.u32 %v355, 7
    %v357 = vsub.s32 0, %v356
    %v358 = vrot.slane %v353, %v357
    %v360 = vadd.f32 %v351, %v358
    %v361 = vadd.f32 %v352, %v358
    %362 = vst [vmem:[#allocation14] sm:$0xff] %v360
    %363 = vst [vmem:[#allocation14 + $0x8] sm:$0xff] %v361
    // Predicated region
    $region58: #{tpu_custom_call.1} parent=1 // pred_check
      _
    $region59: #{tpu_custom_call.1} parent=1 // pred_check_branch
      %365 = sbr.rel (0) target = $region61
    $region60: #{tpu_custom_call.1} parent=1 // pred_region
      %s367 = ssub.s32 256, 256
      %368 = vsyncadd [#allocation4], %s367
      %s369 = sshll.u32 [#allocation14], 4
      %s370 = int_to_ptr.vmem [resolvable:$true] %s369
      %375 = dma.vmem_to_hbm [thread:$0]  %s370, 256, %s7, [#allocation4], 128, 128, 8
    $region61: #{tpu_custom_call.1} parent=1 // pred_fallthru
      _
    // Predicated region
    $region62: #{tpu_custom_call.1} parent=1 // pred_check
      _
    $region63: #{tpu_custom_call.1} parent=1 // pred_check_branch
      %377 = sbr.rel (0) target = $region65
    $region64: #{tpu_custom_call.1} parent=1 // pred_region
      %378 = dma.done [#allocation4], 256
    $region65: #{tpu_custom_call.1} parent=1 // pred_fallthru
      _
    %379 = vsyncpa [#allocation3], 1
    %380 = vsyncpa [#allocation6], 1
    %381 = vsyncpa [#allocation9], 1
    %382 = vsyncpa [#allocation12], 1
    %383 = vsyncpa [#allocation4], 1

</llo_original>
